<compile_context>
chip_gen: v5e
topology: v5e:2x2
jax: 0.10.0
libtpu: 0.0.40
codegen_flags: <defaults>
</compile_context>

<pallas_src>
import functools

import numpy as np
import jax
import jax.numpy as jnp
from jax.experimental import pallas as pl
from jax.experimental.pallas import tpu as pltpu

_EPS = 1e-5


def _round_up(x, m):
    return (x + m - 1) // m * m


# ---------------------------------------------------------------------------
# Pallas kernel: C = act( (A @ B) + bias [+ residual] )
#   A, B, residual are bf16; accumulation is f32 on the MXU.
# ---------------------------------------------------------------------------
def _fused_matmul_kernel(*refs, relu, has_res):
    if has_res:
        a_ref, b_ref, t_ref, r_ref, o_ref, acc_ref = refs
    else:
        a_ref, b_ref, t_ref, o_ref, acc_ref = refs
        r_ref = None

    k = pl.program_id(2)

    @pl.when(k == 0)
    def _():
        acc_ref[...] = jnp.zeros_like(acc_ref)

    acc_ref[...] += jnp.dot(a_ref[...], b_ref[...],
                            preferred_element_type=jnp.float32)

    @pl.when(k == pl.num_programs(2) - 1)
    def _():
        y = acc_ref[...] + t_ref[...]
        if has_res:
            y = y + r_ref[...].astype(jnp.float32)
        if relu:
            y = jnp.maximum(y, 0.0)
        o_ref[...] = y.astype(o_ref.dtype)


@functools.lru_cache(maxsize=None)
def _build_fused_matmul(Mp, Kp, Np, tm, tn, tk, relu, has_res, out_dtype_name):
    kernel = functools.partial(_fused_matmul_kernel, relu=relu, has_res=has_res)
    in_specs = [
        pl.BlockSpec((tm, tk), lambda i, j, k: (i, k)),
        pl.BlockSpec((tk, tn), lambda i, j, k: (k, j)),
        pl.BlockSpec((1, tn), lambda i, j, k: (0, j)),
    ]
    if has_res:
        in_specs.append(pl.BlockSpec((tm, tn), lambda i, j, k: (i, j)))
    return pl.pallas_call(
        kernel,
        out_shape=jax.ShapeDtypeStruct((Mp, Np), jnp.dtype(out_dtype_name)),
        grid_spec=pltpu.PrefetchScalarGridSpec(
            num_scalar_prefetch=0,
            grid=(Mp // tm, Np // tn, Kp // tk),
            in_specs=in_specs,
            out_specs=pl.BlockSpec((tm, tn), lambda i, j, k: (i, j)),
            scratch_shapes=[pltpu.VMEM((tm, tn), jnp.float32)],
        ),
        compiler_params=pltpu.CompilerParams(
            dimension_semantics=("parallel", "parallel", "arbitrary"),
            vmem_limit_bytes=32 * 1024 * 1024,
        ),
    )


def _pick_tiles(M, K, N):
    # Bigger output tiles for the 256x256 MXU generations; working set stays
    # well under v5e's 16 MiB scoped VMEM and v7x's 32 MiB default.
    tm = 512 if M >= 512 else (256 if M >= 256 else 128)
    tn = 512 if N >= 512 else (256 if N >= 256 else 128)
    Kp = _round_up(K, 128)           # pad K only to 128, then pick a divisor tk
    tk = 128
    for cand in (1024, 512, 256):
        if Kp >= cand and Kp % cand == 0:
            tk = cand
            break
    return tm, tn, tk, Kp


def fused_matmul(a, b, bias, relu, residual=None, out_dtype=jnp.float32):
    """out[m,n] = act( sum_k a[m,k] b[k,n] + bias[n] (+ residual[m,n]) )."""
    M, K = a.shape
    _, N = b.shape
    tm, tn, tk, Kp = _pick_tiles(M, K, N)
    Mp, Np = _round_up(M, tm), _round_up(N, tn)
    a_p = jnp.pad(a.astype(jnp.bfloat16), ((0, Mp - M), (0, Kp - K)))
    b_p = jnp.pad(b.astype(jnp.bfloat16), ((0, Kp - K), (0, Np - N)))
    t_p = jnp.pad(bias.astype(jnp.float32).reshape(1, N),
                  ((0, 0), (0, Np - N)))
    args = [a_p, b_p, t_p]
    has_res = residual is not None
    if has_res:
        args.append(jnp.pad(residual.astype(jnp.bfloat16),
                            ((0, Mp - M), (0, Np - N))))
    fn = _build_fused_matmul(Mp, Kp, Np, tm, tn, tk, bool(relu), has_res,
                             jnp.dtype(out_dtype).name)
    out = fn(*args)
    return out[:M, :N]


# ---------------------------------------------------------------------------
# Glue: im2col, pooling, resampling (plain JAX, fused by whole-graph jit)
# ---------------------------------------------------------------------------
def _im2col(x, kh, kw, stride, padding, dilation):
    # x: (N, H, W, C) -> (N*Ho*Wo, kh*kw*C), feature order (kh, kw, C)
    N, H, W, C = x.shape
    Ho = (H + 2 * padding - dilation * (kh - 1) - 1) // stride + 1
    Wo = (W + 2 * padding - dilation * (kw - 1) - 1) // stride + 1
    xp = jnp.pad(x, ((0, 0), (padding, padding), (padding, padding), (0, 0)))
    cols = []
    for i in range(kh):
        for j in range(kw):
            di, dj = i * dilation, j * dilation
            patch = xp[:, di: di + stride * (Ho - 1) + 1: stride,
                          dj: dj + stride * (Wo - 1) + 1: stride, :]
            cols.append(patch)
    cols = jnp.concatenate(cols, axis=-1)
    return cols.reshape(N * Ho * Wo, kh * kw * C), (N, Ho, Wo)


def conv_bn_act(p, x, stride, padding, dilation, relu, residual=None):
    """conv2d (PyTorch NCHW weights) + folded BN + optional residual/ReLU."""
    w = p['w']                              # (C_out, C_in, kh, kw)
    C_out, C_in, kh, kw = w.shape
    if kh == 1 and kw == 1 and padding == 0:
        # 1x1 conv: no im2col needed, just an (optional) stride slice.
        xs = x[:, ::stride, ::stride, :] if stride > 1 else x
        N, Ho, Wo, _ = xs.shape
        cols = xs.reshape(N * Ho * Wo, C_in)
    else:
        # TODO(synk): 3x3 convs still materialize im2col (now in bf16); an
        # implicit-im2col Pallas kernel would remove the remaining 9x HBM
        # expansion on these layers.
        cols, (N, Ho, Wo) = _im2col(x, kh, kw, stride, padding, dilation)
    wmat = jnp.transpose(w, (2, 3, 1, 0)).reshape(kh * kw * C_in, C_out)
    wmat = wmat * p['scale'][None, :]       # fold BN scale into the weights
    res2d = None if residual is None else residual.reshape(N * Ho * Wo, C_out)
    y = fused_matmul(cols, wmat, p['shift'], relu,
                     residual=res2d, out_dtype=jnp.bfloat16)
    return y.reshape(N, Ho, Wo, C_out)


def max_pool_3x3_s2_p1(x):
    N, H, W, C = x.shape
    Ho = (H + 2 - 3) // 2 + 1
    Wo = (W + 2 - 3) // 2 + 1
    xp = jnp.pad(x, ((0, 0), (1, 1), (1, 1), (0, 0)),
                 constant_values=-jnp.inf)
    out = None
    for i in range(3):
        for j in range(3):
            patch = xp[:, i: i + 2 * (Ho - 1) + 1: 2,
                          j: j + 2 * (Wo - 1) + 1: 2, :]
            out = patch if out is None else jnp.maximum(out, patch)
    return out


def _adaptive_pool_matrix(in_size, out_size):
    A = np.zeros((out_size, in_size), np.float32)
    for i in range(out_size):
        s = (i * in_size) // out_size
        e = -((-(i + 1) * in_size) // out_size)     # ceil
        A[i, s:e] = 1.0 / (e - s)
    return jnp.asarray(A)


def adaptive_avg_pool(x, out_size):
    _, H, W, _ = x.shape
    Ah = _adaptive_pool_matrix(H, out_size)
    Aw = _adaptive_pool_matrix(W, out_size)
    return jnp.einsum('oh,nhwc,pw->nopc', Ah, x, Aw)


def _bilinear_matrix(in_size, out_size):
    # F.interpolate(mode='bilinear', align_corners=True)
    A = np.zeros((out_size, in_size), np.float32)
    if out_size == 1:
        A[0, 0] = 1.0
        return jnp.asarray(A)
    for i in range(out_size):
        src = i * (in_size - 1) / (out_size - 1)
        f = int(np.floor(src))
        c = min(f + 1, in_size - 1)
        frac = src - f
        A[i, f] += 1.0 - frac
        A[i, c] += frac
    return jnp.asarray(A)


def bilinear_resize(x, out_h, out_w):
    _, H, W, _ = x.shape
    Ah = _bilinear_matrix(H, out_h)
    Aw = _bilinear_matrix(W, out_w)
    return jnp.einsum('oh,nhwc,pw->nopc', Ah, x, Aw)


# ---------------------------------------------------------------------------
# Deterministic parameter initialization
# ---------------------------------------------------------------------------
class _KeyGen:
    def __init__(self, seed):
        self._key = jax.random.PRNGKey(seed)

    def __call__(self):
        self._key, k = jax.random.split(self._key)
        return k


def init_conv_bn(kg, cin, cout, k):
    fan_in = cin * k * k
    w = jax.random.normal(kg(), (cout, cin, k, k), jnp.float32) / np.sqrt(fan_in)
    gamma = 1.0 + 0.1 * jax.random.normal(kg(), (cout,), jnp.float32)
    beta = 0.05 * jax.random.normal(kg(), (cout,), jnp.float32)
    mean = 0.05 * jax.random.normal(kg(), (cout,), jnp.float32)
    var = 1.0 + 0.1 * jax.random.uniform(kg(), (cout,), jnp.float32)
    scale = gamma / jnp.sqrt(var + _EPS)
    shift = beta - mean * scale
    return {'w': w, 'scale': scale, 'shift': shift}


def init_conv_bias(kg, cin, cout, k):
    fan_in = cin * k * k
    w = jax.random.normal(kg(), (cout, cin, k, k), jnp.float32) / np.sqrt(fan_in)
    b = 0.05 * jax.random.normal(kg(), (cout,), jnp.float32)
    return {'w': w, 'scale': jnp.ones((cout,), jnp.float32), 'shift': b}


def init_bottleneck(kg, cin, cmid, cout, proj):
    p = {'cbr1': init_conv_bn(kg, cin, cmid, 1),
         'cbr2': init_conv_bn(kg, cmid, cmid, 3),
         'cb3': init_conv_bn(kg, cmid, cout, 1)}
    if proj:
        p['res'] = init_conv_bn(kg, cin, cout, 1)
    return p


def init_residual_block(kg, n_blocks, cin, cmid, cout):
    blocks = [init_bottleneck(kg, cin, cmid, cout, True)]
    for _ in range(n_blocks - 1):
        blocks.append(init_bottleneck(kg, cout, cmid, cout, False))
    return blocks


def init_pspnet(seed, n_class):
    kg = _KeyGen(seed)
    return {
        'feature_conv': {'c1': init_conv_bn(kg, 3, 64, 3),
                         'c2': init_conv_bn(kg, 64, 64, 3),
                         'c3': init_conv_bn(kg, 64, 128, 3)},
        'res1': init_residual_block(kg, 3, 128, 64, 256),
        'res2': init_residual_block(kg, 4, 256, 128, 512),
        'dres1': init_residual_block(kg, 6, 512, 256, 1024),
        'dres2': init_residual_block(kg, 3, 1024, 512, 2048),
        'pyramid': [init_conv_bn(kg, 2048, 512, 1) for _ in range(4)],
        'decode': {'cbr': init_conv_bn(kg, 4096, 512, 3),
                   'cls': init_conv_bias(kg, 512, n_class, 1)},
        'aux': {'cbr': init_conv_bn(kg, 1024, 256, 3),
                'cls': init_conv_bias(kg, 256, n_class, 1)},
    }


# ---------------------------------------------------------------------------
# Forward pass
# ---------------------------------------------------------------------------
def bottleneck_fwd(p, x, stride, dilation):
    h = conv_bn_act(p['cbr1'], x, 1, 0, 1, relu=True)
    h = conv_bn_act(p['cbr2'], h, stride, dilation, dilation, relu=True)
    if 'res' in p:
        res = conv_bn_act(p['res'], x, stride, 0, 1, relu=False)
    else:
        res = x
    # residual add + final ReLU fused into the cb3 matmul epilogue
    return conv_bn_act(p['cb3'], h, 1, 0, 1, relu=True, residual=res)


def residual_block_fwd(blocks, x, stride, dilation):
    x = bottleneck_fwd(blocks[0], x, stride, dilation)
    for p in blocks[1:]:
        x = bottleneck_fwd(p, x, 1, dilation)
    return x


def pyramid_pooling_fwd(params, x, pool_sizes=(6, 3, 2, 1), height=30, width=40):
    assert x.shape[1] == height and x.shape[2] == width
    outs = [x]
    for p, size in zip(params, pool_sizes):
        h = adaptive_avg_pool(x, size)
        h = conv_bn_act(p, h, 1, 0, 1, relu=True)
        h = bilinear_resize(h, height, width).astype(x.dtype)
        outs.append(h)
    return jnp.concatenate(outs, axis=-1)


def head_fwd(params, x, out_h, out_w):
    h = conv_bn_act(params['cbr'], x, 1, 1, 1, relu=True)
    # Dropout2d(p=0.1): identity in inference mode.
    h = conv_bn_act(params['cls'], h, 1, 0, 1, relu=False)
    return bilinear_resize(h, out_h, out_w)


@functools.partial(jax.jit, static_argnums=(2, 3))
def pspnet_forward(params, x_nchw, height, width):
    x = jnp.transpose(x_nchw, (0, 2, 3, 1)).astype(jnp.bfloat16)  # NCHW -> NHWC
    fc = params['feature_conv']
    x = conv_bn_act(fc['c1'], x, 2, 1, 1, relu=True)
    x = conv_bn_act(fc['c2'], x, 1, 1, 1, relu=True)
    x = conv_bn_act(fc['c3'], x, 1, 1, 1, relu=True)
    x = max_pool_3x3_s2_p1(x)
    x = residual_block_fwd(params['res1'], x, stride=1, dilation=1)
    x = residual_block_fwd(params['res2'], x, stride=2, dilation=1)
    x = residual_block_fwd(params['dres1'], x, stride=1, dilation=2)
    # As in the torch forward, the aux head result is computed but not
    # returned; under whole-graph jit XLA dead-code-eliminates it for free.
    _output_aux = head_fwd(params['aux'], x, height, width)
    x = residual_block_fwd(params['dres2'], x, stride=1, dilation=4)
    x = pyramid_pooling_fwd(params['pyramid'], x)
    out = head_fwd(params['decode'], x, height, width)
    return jnp.transpose(out, (0, 3, 1, 2)).astype(jnp.float32)  # NHWC -> NCHW


# ---------------------------------------------------------------------------
if __name__ == "__main__":
    # Correctness checks of the fused Pallas matmul kernel (bf16 operands,
    # f32 accumulation), with and without fused residual.
    key = jax.random.PRNGKey(0)
    k1, k2, k3, k4, k5 = jax.random.split(key, 5)
    a = jax.random.normal(k1, (37, 45), jnp.float32)
    b = jax.random.normal(k2, (45, 20), jnp.float32)
    t = jax.random.normal(k3, (20,), jnp.float32)
    r = jax.random.normal(k4, (37, 20), jnp.float32)
    a16 = a.astype(jnp.bfloat16).astype(jnp.float32)
    b16 = b.astype(jnp.bfloat16).astype(jnp.float32)
    r16 = r.astype(jnp.bfloat16).astype(jnp.float32)

    ref = jnp.maximum(a16 @ b16 + t, 0.0)
    got = fused_matmul(a, b, t, relu=True, out_dtype=jnp.float32)
    assert jnp.allclose(got, ref, atol=1e-3, rtol=1e-3), "fused matmul mismatch"

    ref2 = jnp.maximum(a16 @ b16 + t + r16, 0.0)
    got2 = fused_matmul(a, b, t, relu=True, residual=r, out_dtype=jnp.float32)
    assert jnp.allclose(got2, ref2, atol=1e-3, rtol=1e-3), "fused residual mismatch"

    n_class, out_h, out_w = 8, 60, 80
    params = init_pspnet(0, n_class)
    # PyramidPooling hard-codes a 30x40 feature grid, so the smallest input
    # consistent with the module is (N, 3, 240, 320).
    x = jax.random.normal(k5, (1, 3, 240, 320), jnp.float32)
    out = pspnet_forward(params, x, out_h, out_w)
    out = jax.block_until_ready(out)
    assert out.shape == (1, n_class, out_h, out_w)
    assert bool(jnp.all(jnp.isfinite(out)))
    print("KERNEL_OK")
</pallas_src>

<mosaic_0001>
module attributes {stable_mosaic.version = 11 : i64} {
  func.func @_fused_matmul_kernel(%arg0: i32, %arg1: i32, %arg2: i32, %arg3: memref<128x128xbf16, #tpu.memory_space<vmem>>, %arg4: memref<128x128xbf16, #tpu.memory_space<vmem>>, %arg5: memref<1x128xf32, #tpu.memory_space<vmem>>, %arg6: memref<128x128xf32, #tpu.memory_space<vmem>>, %arg7: memref<128x128xf32, #tpu.memory_space<vmem>>) attributes {dimension_semantics = [#tpu.dimension_semantics<parallel>, #tpu.dimension_semantics<parallel>, #tpu.dimension_semantics<arbitrary>], iteration_bounds = array<i64: 1, 1, 1>, scalar_prefetch = 0 : i64, scratch_operands = 1 : i64, tpu.core_type = #tpu.core_type<tc>, window_params = [{transform_indices = @transform_0, window_bounds = array<i64: 128, 128>}, {transform_indices = @transform_1, window_bounds = array<i64: 128, 128>}, {transform_indices = @transform_2, window_bounds = array<i64: 1, 128>}, {transform_indices = @transform_3, window_bounds = array<i64: 128, 128>}]} {
    %c0_i32 = arith.constant 0 : i32
    %0 = arith.cmpi eq, %arg2, %c0_i32 : i32
    %1 = arith.extui %0 : i1 to i32
    %c0_i32_0 = arith.constant 0 : i32
    %2 = arith.cmpi ne, %1, %c0_i32_0 : i32
    scf.if %2 {
      %cst_10 = arith.constant 0.000000e+00 : f32
      %12 = vector.broadcast %cst_10 : f32 to vector<128x128xf32>
      %c0_11 = arith.constant 0 : index
      %c0_12 = arith.constant 0 : index
      %13 = vector.load %arg7[%c0_11, %c0_12] : memref<128x128xf32, #tpu.memory_space<vmem>>, vector<128x128xf32>
      tpu.vector_store %arg7[%c0_11, %c0_12], %12 {strides = array<i32>} : memref<128x128xf32, #tpu.memory_space<vmem>>, vector<128x128xf32>,
    } else {
    }
    %c0 = arith.constant 0 : index
    %c0_1 = arith.constant 0 : index
    %3 = vector.load %arg7[%c0, %c0_1] : memref<128x128xf32, #tpu.memory_space<vmem>>, vector<128x128xf32>
    %c0_2 = arith.constant 0 : index
    %c0_3 = arith.constant 0 : index
    %4 = vector.load %arg3[%c0_2, %c0_3] : memref<128x128xbf16, #tpu.memory_space<vmem>>, vector<128x128xbf16>
    %c0_4 = arith.constant 0 : index
    %c0_5 = arith.constant 0 : index
    %5 = vector.load %arg4[%c0_4, %c0_5] : memref<128x128xbf16, #tpu.memory_space<vmem>>, vector<128x128xbf16>
    %cst = arith.constant dense<0.000000e+00> : vector<128x128xf32>
    %6 = tpu.matmul %4, %5, %cst {dimension_numbers = #tpu.dot_dimension_numbers<[1], [0], [0], [1], [0, 0, 1, 1], [], []>} : vector<128x128xbf16>, vector<128x128xbf16>, vector<128x128xf32> -> vector<128x128xf32>
    %7 = arith.addf %3, %6 : vector<128x128xf32>
    %c0_6 = arith.constant 0 : index
    %c0_7 = arith.constant 0 : index
    %8 = vector.load %arg7[%c0_6, %c0_7] : memref<128x128xf32, #tpu.memory_space<vmem>>, vector<128x128xf32>
    tpu.vector_store %arg7[%c0_6, %c0_7], %7 {strides = array<i32>} : memref<128x128xf32, #tpu.memory_space<vmem>>, vector<128x128xf32>,
    %c0_i32_8 = arith.constant 0 : i32
    %9 = arith.cmpi eq, %arg2, %c0_i32_8 : i32
    %10 = arith.extui %9 : i1 to i32
    %c0_i32_9 = arith.constant 0 : i32
    %11 = arith.cmpi ne, %10, %c0_i32_9 : i32
    scf.if %11 {
      %c0_10 = arith.constant 0 : index
      %c0_11 = arith.constant 0 : index
      %12 = vector.load %arg7[%c0_10, %c0_11] : memref<128x128xf32, #tpu.memory_space<vmem>>, vector<128x128xf32>
      %c0_12 = arith.constant 0 : index
      %c0_13 = arith.constant 0 : index
      %13 = vector.load %arg5[%c0_12, %c0_13] : memref<1x128xf32, #tpu.memory_space<vmem>>, vector<1x128xf32>
      %14 = vector.broadcast %13 : vector<1x128xf32> to vector<128x128xf32>
      %15 = arith.addf %12, %14 : vector<128x128xf32>
      %cst_14 = arith.constant 0.000000e+00 : f32
      %16 = vector.broadcast %cst_14 : f32 to vector<128x128xf32>
      %17 = arith.maximumf %15, %16 : vector<128x128xf32>
      %c0_15 = arith.constant 0 : index
      %c0_16 = arith.constant 0 : index
      %18 = vector.load %arg6[%c0_15, %c0_16] : memref<128x128xf32, #tpu.memory_space<vmem>>, vector<128x128xf32>
      tpu.vector_store %arg6[%c0_15, %c0_16], %17 {strides = array<i32>} : memref<128x128xf32, #tpu.memory_space<vmem>>, vector<128x128xf32>,
    } else {
    }
    return
  }
  func.func @transform_0(%arg0: i32, %arg1: i32, %arg2: i32) -> (i32, i32) {
    %c0_i32 = arith.constant 0 : i32
    return %arg0, %arg2 : i32, i32
  }
  func.func @transform_1(%arg0: i32, %arg1: i32, %arg2: i32) -> (i32, i32) {
    %c0_i32 = arith.constant 0 : i32
    return %arg2, %arg1 : i32, i32
  }
  func.func @transform_2(%arg0: i32, %arg1: i32, %arg2: i32) -> (i32, i32) {
    %c0_i32 = arith.constant 0 : i32
    %c0_i32_0 = arith.constant 0 : i32
    return %c0_i32, %arg1 : i32, i32
  }
  func.func @transform_3(%arg0: i32, %arg1: i32, %arg2: i32) -> (i32, i32) {
    %c0_i32 = arith.constant 0 : i32
    return %arg0, %arg1 : i32, i32
  }
}

</mosaic_0001>

<llo_original>
// kernel: tpu_custom_call.1
$region0: #{tpu_custom_call.1}
  #allocation0 [shape = 'u32[]', space=smem, size = 0x4, offset = 0x4, fixed_abs, tag = 'smem constant byte address 0x4 - core index']
  #allocation1 [shape = 'u32[72,128]{1,0:T(1,128)}', space=vmem, size = 0x9000, scoped, tag = 'internal scratch']
  #allocation2 [shape = 'f32[128,128]{1,0:T(8,128)}', space=vmem, size = 0x10000, scoped, tag = 'scratch operand']
  %s0 = inlined_call_operand.hbm [shape: bf16[128,128], index: 0, kind: input, shape index: {}]
  %s1 = inlined_call_operand.hbm [shape: bf16[128,128], index: 1, kind: input, shape index: {}]
  %s2 = inlined_call_operand.vmem [shape: f32[1,128], index: 2, kind: input, shape index: {}]
  %s3 = inlined_call_operand.hbm [shape: f32[128,128], index: 3, kind: output, shape index: {}]
  %s4 = sld [smem:[#allocation0]]
  $region38: #{tpu_custom_call.1} parent=0
    _
  %s6 = ssub.s32 1, %s4
  %s7 = scalar_select 0, %s6, %s4
  $region1: #{tpu_custom_call.1} parent=0
    #allocation3 [shape = 'u8[32768]{0}', space=vmem, size = 0x8000, scoped, tag = 'input window, operand 0, single buffered']
    #allocation4 [shape = 's32[1]{0}', space=sflag, size = 0x4, scoped, tag = 'scoped memory for tpu_custom_call.1']
    #allocation5 [shape = 's32[1]{0}', space=sflag, size = 0x4, scoped, tag = 'scoped memory for tpu_custom_call.1']
    #allocation6 [shape = 'u8[32768]{0}', space=vmem, size = 0x8000, scoped, tag = 'input window, operand 1, single buffered']
    #allocation7 [shape = 's32[1]{0}', space=sflag, size = 0x4, scoped, tag = 'scoped memory for tpu_custom_call.1']
    #allocation8 [shape = 'u8[65536]{0}', space=vmem, size = 0x10000, scoped, tag = 'output window, operand 0, single buffered']
    %8 = vsyncpa [#allocation4], 0
    %9 = vsyncpa [#allocation7], 0
    %10 = vsyncpa [#allocation5], 0
    // Predicated region
    $region2: #{tpu_custom_call.1} parent=1 // pred_check
      _
    $region3: #{tpu_custom_call.1} parent=1 // pred_check_branch
      %12 = sbr.rel (0) target = $region5
    $region4: #{tpu_custom_call.1} parent=1 // pred_region
      %14 = vsyncadd [#allocation4], 0
      %s15 = sshll.u32 %s0, 4
      %s16 = int_to_ptr.hbm [resolvable:$true] %s15
      %s17 = sshll.u32 [#allocation3], 4
      %s18 = int_to_ptr.vmem [resolvable:$true] %s17
      %23 = dma.hbm_to_vmem [thread:$0]  %s16, 1024, %s18, [#allocation4], 64, 64, 4
    $region5: #{tpu_custom_call.1} parent=1 // pred_fallthru
      _
    // Predicated region
    $region6: #{tpu_custom_call.1} parent=1 // pred_check
      _
    $region7: #{tpu_custom_call.1} parent=1 // pred_check_branch
      %25 = sbr.rel (0) target = $region9
    $region8: #{tpu_custom_call.1} parent=1 // pred_region
      %27 = vsyncadd [#allocation7], 0
      %s28 = sshll.u32 %s1, 4
      %s29 = int_to_ptr.hbm [resolvable:$true] %s28
      %s30 = sshll.u32 [#allocation6], 4
      %s31 = int_to_ptr.vmem [resolvable:$true] %s30
      %36 = dma.hbm_to_vmem [thread:$0]  %s29, 1024, %s31, [#allocation7], 64, 64, 4
    $region9: #{tpu_custom_call.1} parent=1 // pred_fallthru
      _
    // Predicated region
    $region10: #{tpu_custom_call.1} parent=1 // pred_check
      _
    $region11: #{tpu_custom_call.1} parent=1 // pred_check_branch
      %38 = sbr.rel (0) target = $region13
    $region12: #{tpu_custom_call.1} parent=1 // pred_region
      _
    $region13: #{tpu_custom_call.1} parent=1 // pred_fallthru
      _
    // Predicated region
    $region14: #{tpu_custom_call.1} parent=1 // pred_check
      _
    $region15: #{tpu_custom_call.1} parent=1 // pred_check_branch
      %40 = sbr.rel (0) target = $region17
    $region16: #{tpu_custom_call.1} parent=1 // pred_region
      %42 = dma.done [#allocation4], 1024
    $region17: #{tpu_custom_call.1} parent=1 // pred_fallthru
      _
    // Predicated region
    $region18: #{tpu_custom_call.1} parent=1 // pred_check
      _
    $region19: #{tpu_custom_call.1} parent=1 // pred_check_branch
      %44 = sbr.rel (0) target = $region21
    $region20: #{tpu_custom_call.1} parent=1 // pred_region
      %46 = dma.done [#allocation7], 1024
    $region21: #{tpu_custom_call.1} parent=1 // pred_fallthru
      _
    %p47 = scmp.eq.s32.totalorder 0, 0
    // Predicated region
    $region22: #{tpu_custom_call.1} parent=1 // pred_check
      %p48 = pneg %p47
    $region23: #{tpu_custom_call.1} parent=1 // pred_check_branch
      %50 = sbr.rel (%p48) target = $region25
    $region24: #{tpu_custom_call.1} parent=1 // pred_region
      %51 = vst [vmem:[#allocation2] sm:$0xff] 0.0
      %52 = vst [vmem:[#allocation2 + $0x8] sm:$0xff] 0.0
      %53 = vst [vmem:[#allocation2 + $0x10] sm:$0xff] 0.0
      %54 = vst [vmem:[#allocation2 + $0x18] sm:$0xff] 0.0
      %55 = vst [vmem:[#allocation2 + $0x20] sm:$0xff] 0.0
      %56 = vst [vmem:[#allocation2 + $0x28] sm:$0xff] 0.0
      %57 = vst [vmem:[#allocation2 + $0x30] sm:$0xff] 0.0
      %58 = vst [vmem:[#allocation2 + $0x38] sm:$0xff] 0.0
      %59 = vst [vmem:[#allocation2 + $0x40] sm:$0xff] 0.0
      %60 = vst [vmem:[#allocation2 + $0x48] sm:$0xff] 0.0
      %61 = vst [vmem:[#allocation2 + $0x50] sm:$0xff] 0.0
      %62 = vst [vmem:[#allocation2 + $0x58] sm:$0xff] 0.0
      %63 = vst [vmem:[#allocation2 + $0x60] sm:$0xff] 0.0
      %64 = vst [vmem:[#allocation2 + $0x68] sm:$0xff] 0.0
      %65 = vst [vmem:[#allocation2 + $0x70] sm:$0xff] 0.0
      %66 = vst [vmem:[#allocation2 + $0x78] sm:$0xff] 0.0
    $region25: #{tpu_custom_call.1} parent=1 // pred_fallthru
      _
    %v67 = vld [vmem:[#allocation2] sm:$0xff]
    %v68 = vld [vmem:[#allocation2 + $0x8] sm:$0xff]
    %v69 = vld [vmem:[#allocation2 + $0x10] sm:$0xff]
    %v70 = vld [vmem:[#allocation2 + $0x18] sm:$0xff]
    %v71 = vld [vmem:[#allocation2 + $0x20] sm:$0xff]
    %v72 = vld [vmem:[#allocation2 + $0x28] sm:$0xff]
    %v73 = vld [vmem:[#allocation2 + $0x30] sm:$0xff]
    %v74 = vld [vmem:[#allocation2 + $0x38] sm:$0xff]
    %v75 = vld [vmem:[#allocation2 + $0x40] sm:$0xff]
    %v76 = vld [vmem:[#allocation2 + $0x48] sm:$0xff]
    %v77 = vld [vmem:[#allocation2 + $0x50] sm:$0xff]
    %v78 = vld [vmem:[#allocation2 + $0x58] sm:$0xff]
    %v79 = vld [vmem:[#allocation2 + $0x60] sm:$0xff]
    %v80 = vld [vmem:[#allocation2 + $0x68] sm:$0xff]
    %v81 = vld [vmem:[#allocation2 + $0x70] sm:$0xff]
    %v82 = vld [vmem:[#allocation2 + $0x78] sm:$0xff]
    %v83 = vld [vmem:[#allocation3] sm:$0xf]
    %v84 = vld [vmem:[#allocation3 + $0x4] sm:$0xf]
    %v85 = vld [vmem:[#allocation3 + $0x8] sm:$0xf]
    %v86 = vld [vmem:[#allocation3 + $0xc] sm:$0xf]
    %v87 = vld [vmem:[#allocation3 + $0x10] sm:$0xf]
    %v88 = vld [vmem:[#allocation3 + $0x14] sm:$0xf]
    %v89 = vld [vmem:[#allocation3 + $0x18] sm:$0xf]
    %v90 = vld [vmem:[#allocation3 + $0x1c] sm:$0xf]
    %v91 = vld [vmem:[#allocation3 + $0x20] sm:$0xf]
    %v92 = vld [vmem:[#allocation3 + $0x24] sm:$0xf]
    %v93 = vld [vmem:[#allocation3 + $0x28] sm:$0xf]
    %v94 = vld [vmem:[#allocation3 + $0x2c] sm:$0xf]
    %v95 = vld [vmem:[#allocation3 + $0x30] sm:$0xf]
    %v96 = vld [vmem:[#allocation3 + $0x34] sm:$0xf]
    %v97 = vld [vmem:[#allocation3 + $0x38] sm:$0xf]
    %v98 = vld [vmem:[#allocation3 + $0x3c] sm:$0xf]
    %v99 = vld [vmem:[#allocation6] sm:$0xf]
    %v100 = vld [vmem:[#allocation6 + $0x4] sm:$0xf]
    %v101 = vld [vmem:[#allocation6 + $0x8] sm:$0xf]
    %v102 = vld [vmem:[#allocation6 + $0xc] sm:$0xf]
    %v103 = vld [vmem:[#allocation6 + $0x10] sm:$0xf]
    %v104 = vld [vmem:[#allocation6 + $0x14] sm:$0xf]
    %v105 = vld [vmem:[#allocation6 + $0x18] sm:$0xf]
    %v106 = vld [vmem:[#allocation6 + $0x1c] sm:$0xf]
    %v107 = vld [vmem:[#allocation6 + $0x20] sm:$0xf]
    %v108 = vld [vmem:[#allocation6 + $0x24] sm:$0xf]
    %v109 = vld [vmem:[#allocation6 + $0x28] sm:$0xf]
    %v110 = vld [vmem:[#allocation6 + $0x2c] sm:$0xf]
    %v111 = vld [vmem:[#allocation6 + $0x30] sm:$0xf]
    %v112 = vld [vmem:[#allocation6 + $0x34] sm:$0xf]
    %v113 = vld [vmem:[#allocation6 + $0x38] sm:$0xf]
    %v114 = vld [vmem:[#allocation6 + $0x3c] sm:$0xf]
    %v131 = vunpack.c.l.b16 %v83
    %v132 = vunpack.c.l.b16 %v84
    %v133 = vunpack.c.l.b16 %v85
    %v134 = vunpack.c.l.b16 %v86
    %v135 = vunpack.c.l.b16 %v87
    %v136 = vunpack.c.l.b16 %v88
    %v137 = vunpack.c.l.b16 %v89
    %v138 = vunpack.c.l.b16 %v90
    %v139 = vunpack.c.l.b16 %v91
    %v140 = vunpack.c.l.b16 %v92
    %v141 = vunpack.c.l.b16 %v93
    %v142 = vunpack.c.l.b16 %v94
    %v143 = vunpack.c.l.b16 %v95
    %v144 = vunpack.c.l.b16 %v96
    %v145 = vunpack.c.l.b16 %v97
    %v146 = vunpack.c.l.b16 %v98
    %v147 = vpack.c.b16 %v132, %v131
    %v148 = vpack.c.b16 %v134, %v133
    %v149 = vpack.c.b16 %v136, %v135
    %v150 = vpack.c.b16 %v138, %v137
    %v151 = vpack.c.b16 %v140, %v139
    %v152 = vpack.c.b16 %v142, %v141
    %v153 = vpack.c.b16 %v144, %v143
    %v154 = vpack.c.b16 %v146, %v145
    %v179 = vunpack.c.l.b16 %v99
    %v180 = vunpack.c.l.b16 %v100
    %v181 = vunpack.c.l.b16 %v101
    %v182 = vunpack.c.l.b16 %v102
    %v183 = vunpack.c.l.b16 %v103
    %v184 = vunpack.c.l.b16 %v104
    %v185 = vunpack.c.l.b16 %v105
    %v186 = vunpack.c.l.b16 %v106
    %v187 = vunpack.c.l.b16 %v107
    %v188 = vunpack.c.l.b16 %v108
    %v189 = vunpack.c.l.b16 %v109
    %v190 = vunpack.c.l.b16 %v110
    %v191 = vunpack.c.l.b16 %v111
    %v192 = vunpack.c.l.b16 %v112
    %v193 = vunpack.c.l.b16 %v113
    %v194 = vunpack.c.l.b16 %v114
    %v195 = vpack.c.b16 %v180, %v179
    %v196 = vpack.c.b16 %v182, %v181
    %v197 = vpack.c.b16 %v184, %v183
    %v198 = vpack.c.b16 %v186, %v185
    %v199 = vpack.c.b16 %v188, %v187
    %v200 = vpack.c.b16 %v190, %v189
    %v201 = vpack.c.b16 %v192, %v191
    %v202 = vpack.c.b16 %v194, %v193
    %211 = vmatpush.bf16.msra.mxu0 %v202
    %212 = vmatpush.bf16.msra.mxu0 %v201
    %213 = vmatpush.bf16.msra.mxu0 %v200
    %214 = vmatpush.bf16.msra.mxu0 %v199
    %215 = vmatpush.bf16.msra.mxu0 %v198
    %216 = vmatpush.bf16.msra.mxu0 %v197
    %217 = vmatpush.bf16.msra.mxu0 %v196
    %218 = vmatpush.bf16.msra.mxu0 %v195
    %219 = vmatmul.bf16.gmra.mxu0 %v147
    %v220 = vpop.f32.mrf.mxu0
    %v221 = vadd.f32 0.0, %v220
    %v222 = vpop.f32.mrf.mxu0
    %v223 = vadd.f32 0.0, %v222
    %224 = vmatmul.bf16.gmra.mxu0 %v148
    %v225 = vpop.f32.mrf.mxu0
    %v226 = vadd.f32 0.0, %v225
    %v227 = vpop.f32.mrf.mxu0
    %v228 = vadd.f32 0.0, %v227
    %229 = vmatmul.bf16.gmra.mxu0 %v149
    %v230 = vpop.f32.mrf.mxu0
    %v231 = vadd.f32 0.0, %v230
    %v232 = vpop.f32.mrf.mxu0
    %v233 = vadd.f32 0.0, %v232
    %234 = vmatmul.bf16.gmra.mxu0 %v150
    %v235 = vpop.f32.mrf.mxu0
    %v236 = vadd.f32 0.0, %v235
    %v237 = vpop.f32.mrf.mxu0
    %v238 = vadd.f32 0.0, %v237
    %239 = vmatmul.bf16.gmra.mxu0 %v151
    %v240 = vpop.f32.mrf.mxu0
    %v241 = vadd.f32 0.0, %v240
    %v242 = vpop.f32.mrf.mxu0
    %v243 = vadd.f32 0.0, %v242
    %244 = vmatmul.bf16.gmra.mxu0 %v152
    %v245 = vpop.f32.mrf.mxu0
    %v246 = vadd.f32 0.0, %v245
    %v247 = vpop.f32.mrf.mxu0
    %v248 = vadd.f32 0.0, %v247
    %249 = vmatmul.bf16.gmra.mxu0 %v153
    %v250 = vpop.f32.mrf.mxu0
    %v251 = vadd.f32 0.0, %v250
    %v252 = vpop.f32.mrf.mxu0
    %v253 = vadd.f32 0.0, %v252
    %254 = vmatmul.bf16.gmra.mxu0 %v154
    %v255 = vpop.f32.mrf.mxu0
    %v256 = vadd.f32 0.0, %v255
    %v257 = vpop.f32.mrf.mxu0
    %v258 = vadd.f32 0.0, %v257
    %259 = vdwg.mxu0
    %v260 = vadd.f32 %v67, %v221
    %v261 = vadd.f32 %v68, %v223
    %v262 = vadd.f32 %v69, %v226
    %v263 = vadd.f32 %v70, %v228
    %v264 = vadd.f32 %v71, %v231
    %v265 = vadd.f32 %v72, %v233
    %v266 = vadd.f32 %v73, %v236
    %v267 = vadd.f32 %v74, %v238
    %v268 = vadd.f32 %v75, %v241
    %v269 = vadd.f32 %v76, %v243
    %v270 = vadd.f32 %v77, %v246
    %v271 = vadd.f32 %v78, %v248
    %v272 = vadd.f32 %v79, %v251
    %v273 = vadd.f32 %v80, %v253
    %v274 = vadd.f32 %v81, %v256
    %v275 = vadd.f32 %v82, %v258
    %276 = vst [vmem:[#allocation2] sm:$0xff] %v260
    %277 = vst [vmem:[#allocation2 + $0x8] sm:$0xff] %v261
    %278 = vst [vmem:[#allocation2 + $0x10] sm:$0xff] %v262
    %279 = vst [vmem:[#allocation2 + $0x18] sm:$0xff] %v263
    %280 = vst [vmem:[#allocation2 + $0x20] sm:$0xff] %v264
    %281 = vst [vmem:[#allocation2 + $0x28] sm:$0xff] %v265
    %282 = vst [vmem:[#allocation2 + $0x30] sm:$0xff] %v266
    %283 = vst [vmem:[#allocation2 + $0x38] sm:$0xff] %v267
    %284 = vst [vmem:[#allocation2 + $0x40] sm:$0xff] %v268
    %285 = vst [vmem:[#allocation2 + $0x48] sm:$0xff] %v269
    %286 = vst [vmem:[#allocation2 + $0x50] sm:$0xff] %v270
    %287 = vst [vmem:[#allocation2 + $0x58] sm:$0xff] %v271
    %288 = vst [vmem:[#allocation2 + $0x60] sm:$0xff] %v272
    %289 = vst [vmem:[#allocation2 + $0x68] sm:$0xff] %v273
    %290 = vst [vmem:[#allocation2 + $0x70] sm:$0xff] %v274
    %291 = vst [vmem:[#allocation2 + $0x78] sm:$0xff] %v275
    // Predicated region
    $region26: #{tpu_custom_call.1} parent=1 // pred_check
      %p292 = pneg %p47
    $region27: #{tpu_custom_call.1} parent=1 // pred_check_branch
      %294 = sbr.rel (%p292) target = $region29
    $region28: #{tpu_custom_call.1} parent=1 // pred_region
      %v295 = vld [vmem:[#allocation2] sm:$0xff]
      %v296 = vld [vmem:[#allocation2 + $0x8] sm:$0xff]
      %v297 = vld [vmem:[#allocation2 + $0x10] sm:$0xff]
      %v298 = vld [vmem:[#allocation2 + $0x18] sm:$0xff]
      %v299 = vld [vmem:[#allocation2 + $0x20] sm:$0xff]
      %v300 = vld [vmem:[#allocation2 + $0x28] sm:$0xff]
      %v301 = vld [vmem:[#allocation2 + $0x30] sm:$0xff]
      %v302 = vld [vmem:[#allocation2 + $0x38] sm:$0xff]
      %v303 = vld [vmem:[#allocation2 + $0x40] sm:$0xff]
      %v304 = vld [vmem:[#allocation2 + $0x48] sm:$0xff]
      %v305 = vld [vmem:[#allocation2 + $0x50] sm:$0xff]
      %v306 = vld [vmem:[#allocation2 + $0x58] sm:$0xff]
      %v307 = vld [vmem:[#allocation2 + $0x60] sm:$0xff]
      %v308 = vld [vmem:[#allocation2 + $0x68] sm:$0xff]
      %v309 = vld [vmem:[#allocation2 + $0x70] sm:$0xff]
      %v310 = vld [vmem:[#allocation2 + $0x78] sm:$0xff]
      %v311 = vld [vmem:[%s2] sm:$0x1]
      %v313 = vperm.slane %v311, 0
      %v315 = vadd.f32 %v295, %v313
      %v316 = vadd.f32 %v296, %v313
      %v317 = vadd.f32 %v297, %v313
      %v318 = vadd.f32 %v298, %v313
      %v319 = vadd.f32 %v299, %v313
      %v320 = vadd.f32 %v300, %v313
      %v321 = vadd.f32 %v301, %v313
      %v322 = vadd.f32 %v302, %v313
      %v323 = vadd.f32 %v303, %v313
      %v324 = vadd.f32 %v304, %v313
      %v325 = vadd.f32 %v305, %v313
      %v326 = vadd.f32 %v306, %v313
      %v327 = vadd.f32 %v307, %v313
      %v328 = vadd.f32 %v308, %v313
      %v329 = vadd.f32 %v309, %v313
      %v330 = vadd.f32 %v310, %v313
      %v331 = vmax.f32 %v315, 0.0
      %v332 = vmax.f32 %v316, 0.0
      %v333 = vmax.f32 %v317, 0.0
      %v334 = vmax.f32 %v318, 0.0
      %v335 = vmax.f32 %v319, 0.0
      %v336 = vmax.f32 %v320, 0.0
      %v337 = vmax.f32 %v321, 0.0
      %v338 = vmax.f32 %v322, 0.0
      %v339 = vmax.f32 %v323, 0.0
      %v340 = vmax.f32 %v324, 0.0
      %v341 = vmax.f32 %v325, 0.0
      %v342 = vmax.f32 %v326, 0.0
      %v343 = vmax.f32 %v327, 0.0
      %v344 = vmax.f32 %v328, 0.0
      %v345 = vmax.f32 %v329, 0.0
      %v346 = vmax.f32 %v330, 0.0
      %347 = vst [vmem:[#allocation8] sm:$0xff] %v331
      %348 = vst [vmem:[#allocation8 + $0x8] sm:$0xff] %v332
      %349 = vst [vmem:[#allocation8 + $0x10] sm:$0xff] %v333
      %350 = vst [vmem:[#allocation8 + $0x18] sm:$0xff] %v334
      %351 = vst [vmem:[#allocation8 + $0x20] sm:$0xff] %v335
      %352 = vst [vmem:[#allocation8 + $0x28] sm:$0xff] %v336
      %353 = vst [vmem:[#allocation8 + $0x30] sm:$0xff] %v337
      %354 = vst [vmem:[#allocation8 + $0x38] sm:$0xff] %v338
      %355 = vst [vmem:[#allocation8 + $0x40] sm:$0xff] %v339
      %356 = vst [vmem:[#allocation8 + $0x48] sm:$0xff] %v340
      %357 = vst [vmem:[#allocation8 + $0x50] sm:$0xff] %v341
      %358 = vst [vmem:[#allocation8 + $0x58] sm:$0xff] %v342
      %359 = vst [vmem:[#allocation8 + $0x60] sm:$0xff] %v343
      %360 = vst [vmem:[#allocation8 + $0x68] sm:$0xff] %v344
      %361 = vst [vmem:[#allocation8 + $0x70] sm:$0xff] %v345
      %362 = vst [vmem:[#allocation8 + $0x78] sm:$0xff] %v346
    $region29: #{tpu_custom_call.1} parent=1 // pred_fallthru
      _
    // Predicated region
    $region30: #{tpu_custom_call.1} parent=1 // pred_check
      _
    $region31: #{tpu_custom_call.1} parent=1 // pred_check_branch
      %364 = sbr.rel (0) target = $region33
    $region32: #{tpu_custom_call.1} parent=1 // pred_region
      %366 = vsyncadd [#allocation5], 0
      %s367 = sshll.u32 [#allocation8], 4
      %s368 = int_to_ptr.vmem [resolvable:$true] %s367
      %s369 = sshll.u32 %s3, 4
      %s370 = int_to_ptr.hbm [resolvable:$true] %s369
      %375 = dma.vmem_to_hbm [thread:$0]  %s368, 2048, %s370, [#allocation5], 128, 128, 8
    $region33: #{tpu_custom_call.1} parent=1 // pred_fallthru
      _
    // Predicated region
    $region34: #{tpu_custom_call.1} parent=1 // pred_check
      _
    $region35: #{tpu_custom_call.1} parent=1 // pred_check_branch
      %377 = sbr.rel (0) target = $region37
    $region36: #{tpu_custom_call.1} parent=1 // pred_region
      %379 = dma.done [#allocation5], 2048
    $region37: #{tpu_custom_call.1} parent=1 // pred_fallthru
      _
    %380 = vsyncpa [#allocation4], 1
    %381 = vsyncpa [#allocation7], 1
    %382 = vsyncpa [#allocation5], 1

</llo_original>
